<compile_context>
chip_gen: v7x
topology: tpu7x:2x2x1
jax: 0.10.0
libtpu: 0.0.40
codegen_flags: <defaults>
</compile_context>

<pallas_src>
import math
import functools

import jax
import jax.numpy as jnp
from jax.experimental import pallas as pl
from jax.experimental.pallas import tpu as pltpu


# ----------------------------------------------------------------------------
# In-kernel float quantization (round-to-nearest-even to `man` mantissa bits,
# clamp to the dynamic range of `exp` exponent bits).  Identity for (8, 23).
# ----------------------------------------------------------------------------
def _float_quantize(x, exp_bits: int, man_bits: int):
    if exp_bits == 8 and man_bits == 23:
        return x  # exactly float32: no-op

    shift = 23 - man_bits
    if shift > 0:
        bits = pltpu.bitcast(x, jnp.uint32)
        # round-to-nearest-even on the mantissa
        lsb = (bits >> shift) & jnp.uint32(1)
        round_add = lsb + jnp.uint32((1 << (shift - 1)) - 1)
        mask = jnp.uint32((~((1 << shift) - 1)) & 0xFFFFFFFF)
        rounded = (bits + round_add) & mask
        y = pltpu.bitcast(rounded, jnp.float32)
    else:
        y = x

    # clamp magnitude to the largest representable value of the (exp, man) fmt
    max_exp = (1 << (exp_bits - 1)) - 1
    max_val = (2.0 - 2.0 ** (-man_bits)) * (2.0 ** max_exp)
    y = jnp.clip(y, -max_val, max_val)
    # keep NaN/Inf untouched (the integer round-add could carry out of a NaN
    # mantissa otherwise)
    y = jnp.where(jnp.isfinite(x), y, x)
    # TODO(synk): subnormal flushing / underflow behaviour of CPDtorch's
    # float_quantize is not reproduced for exp_bits < 8.
    return y


# ----------------------------------------------------------------------------
# Pallas kernel: tiled GEMM  out = quant(x @ w_t) + bias
#   x_ref: (tm, tk), w_ref: (tk, tn), b_ref: (1, tn), o_ref: (tm, tn)
# The output block index is constant across the k axis, so o_ref stays
# resident in VMEM and is used directly as the f32 accumulator.
# ----------------------------------------------------------------------------
def _quant_linear_kernel(*refs, exp, man, has_bias):
    if has_bias:
        x_ref, w_ref, b_ref, o_ref = refs
    else:
        x_ref, w_ref, o_ref = refs
        b_ref = None

    k = pl.program_id(2)

    @pl.when(k == 0)
    def _():
        o_ref[...] = jnp.zeros_like(o_ref)

    o_ref[...] += jnp.dot(x_ref[...], w_ref[...],
                          preferred_element_type=jnp.float32)

    @pl.when(k == pl.num_programs(2) - 1)
    def _():
        out = _float_quantize(o_ref[...], exp, man)
        if has_bias:
            out = out + b_ref[...]  # (1, tn) broadcast over rows
        o_ref[...] = out


def _round_up(x, m):
    return ((x + m - 1) // m) * m


def _pad2(a, rows, cols):
    pr, pc = rows - a.shape[0], cols - a.shape[1]
    if pr or pc:
        a = jnp.pad(a, ((0, pr), (0, pc)))
    return a


def quant_linear(x, weight, bias=None, *, exp=8, man=23):
    """Forward pass of Quant_Linear.

    x:      (M, K) float    (any float dtype; computed in f32)
    weight: (N, K) float    (out_features, in_features)
    bias:   (N,)   float or None
    returns (M, N) float32
    """
    M, K = x.shape
    N, K2 = weight.shape
    assert K == K2
    has_bias = bias is not None

    if x.dtype != jnp.float32:
        x = x.astype(jnp.float32)
    if weight.dtype != jnp.float32:
        weight = weight.astype(jnp.float32)

    # ---- tile selection (multiples of (8,128); padded dims, cdiv-free grid) --
    # tm=tn<=512, tk<=1024  ->  ~11 MiB f32 double-buffered: fits v5e's 16 MiB
    # default scoped VMEM and v7x's 32 MiB scoped / 64 MiB physical VMEM.
    tm = min(512, _round_up(M, 8))
    tn = min(512, _round_up(N, 128))
    tk = min(1024, _round_up(K, 128))
    M_pad = _round_up(M, tm)
    N_pad = _round_up(N, tn)
    K_pad = _round_up(K, tk)

    # v7x megacore: keep the parallel (i, j) grid >= 2 blocks when cheap to do
    # so, otherwise one TensorCore idles.
    if (M_pad // tm) * (N_pad // tn) == 1:
        if N_pad >= 256 and (N_pad // 2) % 128 == 0:
            tn = N_pad // 2
        elif M_pad >= 16 and (M_pad // 2) % 8 == 0:
            tm = M_pad // 2

    grid = (M_pad // tm, N_pad // tn, K_pad // tk)

    # ---- operand prep: zero-pad, pre-transpose weight once to (K, N) --------
    x_p = _pad2(x, M_pad, K_pad)
    w_t = _pad2(weight.T, K_pad, N_pad)          # one-time HBM transpose

    in_specs = [
        pl.BlockSpec((tm, tk), lambda i, j, k: (i, k)),   # x
        pl.BlockSpec((tk, tn), lambda i, j, k: (k, j)),   # weight (K, N)
    ]
    args = [x_p, w_t]
    if has_bias:
        b_p = _pad2(bias.astype(jnp.float32).reshape(1, N), 1, N_pad)
        in_specs.append(pl.BlockSpec((1, tn), lambda i, j, k: (0, j)))
        args.append(b_p)

    kernel = functools.partial(_quant_linear_kernel, exp=exp, man=man,
                               has_bias=has_bias)

    cost = pl.CostEstimate(
        flops=2 * M * N * K,
        transcendentals=0,
        bytes_accessed=4 * (M * K + K * N + M * N + (N if has_bias else 0)),
    )

    out = pl.pallas_call(
        kernel,
        out_shape=jax.ShapeDtypeStruct((M_pad, N_pad), jnp.float32),
        grid_spec=pltpu.PrefetchScalarGridSpec(
            num_scalar_prefetch=0,
            grid=grid,
            in_specs=in_specs,
            out_specs=pl.BlockSpec((tm, tn), lambda i, j, k: (i, j)),
        ),
        compiler_params=pltpu.CompilerParams(
            dimension_semantics=("parallel", "parallel", "arbitrary"),
            vmem_limit_bytes=32 * 1024 * 1024),
        cost_estimate=cost,
    )(*args)

    if M_pad != M or N_pad != N:
        out = out[:M, :N]
    return out


# ----------------------------------------------------------------------------
# Deterministic parameter init mirroring Quant_Linear.reset_parameters():
#   kaiming_uniform_(weight, a=sqrt(5))  ->  U(-1/sqrt(fan_in), 1/sqrt(fan_in))
#   bias ~ U(-1/sqrt(fan_in), 1/sqrt(fan_in))
# ----------------------------------------------------------------------------
def init_quant_linear_params(key, in_features, out_features, use_bias=True):
    kw, kb = jax.random.split(key)
    bound = 1.0 / math.sqrt(in_features)
    weight = jax.random.uniform(kw, (out_features, in_features),
                                jnp.float32, -bound, bound)
    bias = (jax.random.uniform(kb, (out_features,), jnp.float32, -bound, bound)
            if use_bias else None)
    return weight, bias


if __name__ == "__main__":
    key = jax.random.PRNGKey(0)
    k_in, k_param, k_in2, k_param2 = jax.random.split(key, 4)

    # -- default format (exp=8, man=23): bit-exact f32 linear -----------------
    batch, in_features, out_features = 8, 32, 64
    x = jax.random.normal(k_in, (batch, in_features), jnp.float32)
    weight, bias = init_quant_linear_params(k_param, in_features, out_features,
                                            use_bias=True)
    out = jax.block_until_ready(quant_linear(x, weight, bias, exp=8, man=23))
    ref = x @ weight.T + bias[None, :]
    assert out.shape == (batch, out_features)
    assert jnp.allclose(out, ref, atol=1e-5, rtol=1e-5)

    # -- awkward (non-aligned) shapes, no bias: exercises the padding path ----
    M2, K2, N2 = 5, 70, 33
    x2 = jax.random.normal(k_in2, (M2, K2), jnp.float32)
    w2, _ = init_quant_linear_params(k_param2, K2, N2, use_bias=False)
    out2 = jax.block_until_ready(quant_linear(x2, w2, None, exp=8, man=23))
    ref2 = x2 @ w2.T
    assert out2.shape == (M2, N2)
    assert jnp.allclose(out2, ref2, atol=1e-5, rtol=1e-5)

    # -- custom (exp, man) path smoke test (fp16-like format) -----------------
    out3 = jax.block_until_ready(quant_linear(x, weight, bias, exp=5, man=10))
    assert out3.shape == (batch, out_features)
    assert bool(jnp.all(jnp.isfinite(out3)))
    assert jnp.allclose(out3, ref, atol=1e-1, rtol=1e-1)

    print("KERNEL_OK")
</pallas_src>

<mosaic_0001>
module attributes {stable_mosaic.version = 11 : i64} {
  func.func @_quant_linear_kernel(%arg0: i32, %arg1: i32, %arg2: i32, %arg3: memref<8x128xf32, #tpu.memory_space<vmem>>, %arg4: memref<128x128xf32, #tpu.memory_space<vmem>>, %arg5: memref<1x128xf32, #tpu.memory_space<vmem>>, %arg6: memref<8x128xf32, #tpu.memory_space<vmem>>) attributes {dimension_semantics = [#tpu.dimension_semantics<parallel>, #tpu.dimension_semantics<parallel>, #tpu.dimension_semantics<arbitrary>], iteration_bounds = array<i64: 1, 1, 1>, scalar_prefetch = 0 : i64, scratch_operands = 0 : i64, tpu.core_type = #tpu.core_type<tc>, window_params = [{transform_indices = @transform_0, window_bounds = array<i64: 8, 128>}, {transform_indices = @transform_1, window_bounds = array<i64: 128, 128>}, {transform_indices = @transform_2, window_bounds = array<i64: 1, 128>}, {transform_indices = @transform_3, window_bounds = array<i64: 8, 128>}]} {
    %c0_i32 = arith.constant 0 : i32
    %0 = arith.cmpi eq, %arg2, %c0_i32 : i32
    %1 = arith.extui %0 : i1 to i32
    %c0_i32_0 = arith.constant 0 : i32
    %2 = arith.cmpi ne, %1, %c0_i32_0 : i32
    scf.if %2 {
      %cst_10 = arith.constant 0.000000e+00 : f32
      %12 = vector.broadcast %cst_10 : f32 to vector<8x128xf32>
      %c0_11 = arith.constant 0 : index
      %c0_12 = arith.constant 0 : index
      %13 = vector.load %arg6[%c0_11, %c0_12] : memref<8x128xf32, #tpu.memory_space<vmem>>, vector<8x128xf32>
      tpu.vector_store %arg6[%c0_11, %c0_12], %12 {strides = array<i32>} : memref<8x128xf32, #tpu.memory_space<vmem>>, vector<8x128xf32>,
    } else {
    }
    %c0 = arith.constant 0 : index
    %c0_1 = arith.constant 0 : index
    %3 = vector.load %arg6[%c0, %c0_1] : memref<8x128xf32, #tpu.memory_space<vmem>>, vector<8x128xf32>
    %c0_2 = arith.constant 0 : index
    %c0_3 = arith.constant 0 : index
    %4 = vector.load %arg3[%c0_2, %c0_3] : memref<8x128xf32, #tpu.memory_space<vmem>>, vector<8x128xf32>
    %c0_4 = arith.constant 0 : index
    %c0_5 = arith.constant 0 : index
    %5 = vector.load %arg4[%c0_4, %c0_5] : memref<128x128xf32, #tpu.memory_space<vmem>>, vector<128x128xf32>
    %cst = arith.constant dense<0.000000e+00> : vector<8x128xf32>
    %6 = tpu.matmul %4, %5, %cst {dimension_numbers = #tpu.dot_dimension_numbers<[1], [0], [0], [1], [0, 0, 1, 1], [], []>} : vector<8x128xf32>, vector<128x128xf32>, vector<8x128xf32> -> vector<8x128xf32>
    %7 = arith.addf %3, %6 : vector<8x128xf32>
    %c0_6 = arith.constant 0 : index
    %c0_7 = arith.constant 0 : index
    %8 = vector.load %arg6[%c0_6, %c0_7] : memref<8x128xf32, #tpu.memory_space<vmem>>, vector<8x128xf32>
    tpu.vector_store %arg6[%c0_6, %c0_7], %7 {strides = array<i32>} : memref<8x128xf32, #tpu.memory_space<vmem>>, vector<8x128xf32>,
    %c0_i32_8 = arith.constant 0 : i32
    %9 = arith.cmpi eq, %arg2, %c0_i32_8 : i32
    %10 = arith.extui %9 : i1 to i32
    %c0_i32_9 = arith.constant 0 : i32
    %11 = arith.cmpi ne, %10, %c0_i32_9 : i32
    scf.if %11 {
      %c0_10 = arith.constant 0 : index
      %c0_11 = arith.constant 0 : index
      %12 = vector.load %arg6[%c0_10, %c0_11] : memref<8x128xf32, #tpu.memory_space<vmem>>, vector<8x128xf32>
      %c0_12 = arith.constant 0 : index
      %c0_13 = arith.constant 0 : index
      %13 = vector.load %arg5[%c0_12, %c0_13] : memref<1x128xf32, #tpu.memory_space<vmem>>, vector<1x128xf32>
      %14 = vector.broadcast %13 : vector<1x128xf32> to vector<8x128xf32>
      %15 = arith.addf %12, %14 : vector<8x128xf32>
      %c0_14 = arith.constant 0 : index
      %c0_15 = arith.constant 0 : index
      %16 = vector.load %arg6[%c0_14, %c0_15] : memref<8x128xf32, #tpu.memory_space<vmem>>, vector<8x128xf32>
      tpu.vector_store %arg6[%c0_14, %c0_15], %15 {strides = array<i32>} : memref<8x128xf32, #tpu.memory_space<vmem>>, vector<8x128xf32>,
    } else {
    }
    return
  }
  func.func @transform_0(%arg0: i32, %arg1: i32, %arg2: i32) -> (i32, i32) {
    %c0_i32 = arith.constant 0 : i32
    return %arg0, %arg2 : i32, i32
  }
  func.func @transform_1(%arg0: i32, %arg1: i32, %arg2: i32) -> (i32, i32) {
    %c0_i32 = arith.constant 0 : i32
    return %arg2, %arg1 : i32, i32
  }
  func.func @transform_2(%arg0: i32, %arg1: i32, %arg2: i32) -> (i32, i32) {
    %c0_i32 = arith.constant 0 : i32
    %c0_i32_0 = arith.constant 0 : i32
    return %c0_i32, %arg1 : i32, i32
  }
  func.func @transform_3(%arg0: i32, %arg1: i32, %arg2: i32) -> (i32, i32) {
    %c0_i32 = arith.constant 0 : i32
    return %arg0, %arg1 : i32, i32
  }
}

</mosaic_0001>

<llo_original>
// kernel: tpu_custom_call.1
$region0: #{tpu_custom_call.1}
  #allocation0 [shape = 'u32[]', space=smem, size = 0x4, offset = 0x4, fixed_abs, tag = 'smem constant byte address 0x4 - core index']
  #allocation1 [shape = 'u32[144,128]{1,0:T(1,128)}', space=vmem, size = 0x12000, scoped, tag = 'internal scratch']
  %s0 = inlined_call_operand.hbm [shape: f32[8,128], index: 0, kind: input, shape index: {}]
  %s1 = inlined_call_operand.hbm [shape: f32[128,128], index: 1, kind: input, shape index: {}]
  %s2 = inlined_call_operand.vmem [shape: f32[1,128], index: 2, kind: input, shape index: {}]
  %s3 = inlined_call_operand.hbm [shape: f32[8,128], index: 3, kind: output, shape index: {}]
  %s4 = sld [smem:[#allocation0]]
  $region38: #{tpu_custom_call.1} parent=0
    _
  %s6 = ssub.s32 1, %s4
  %s7 = scalar_select 0, %s6, %s4
  $region1: #{tpu_custom_call.1} parent=0
    #allocation2 [shape = 'u8[4096]{0}', space=vmem, size = 0x1000, scoped, tag = 'input window, operand 0, single buffered']
    #allocation3 [shape = 's32[1]{0}', space=sflag, size = 0x4, scoped, tag = 'scoped memory for tpu_custom_call.1']
    #allocation4 [shape = 's32[1]{0}', space=sflag, size = 0x4, scoped, tag = 'scoped memory for tpu_custom_call.1']
    #allocation5 [shape = 'u8[65536]{0}', space=vmem, size = 0x10000, scoped, tag = 'input window, operand 1, single buffered']
    #allocation6 [shape = 's32[1]{0}', space=sflag, size = 0x4, scoped, tag = 'scoped memory for tpu_custom_call.1']
    #allocation7 [shape = 'u8[4096]{0}', space=vmem, size = 0x1000, scoped, tag = 'output window, operand 0, single buffered']
    %8 = vsyncpa [#allocation3], 0
    %9 = vsyncpa [#allocation6], 0
    %10 = vsyncpa [#allocation4], 0
    // Predicated region
    $region2: #{tpu_custom_call.1} parent=1 // pred_check
      _
    $region3: #{tpu_custom_call.1} parent=1 // pred_check_branch
      %12 = sbr.rel (0) target = $region5
    $region4: #{tpu_custom_call.1} parent=1 // pred_region
      %s14 = ssub.s32 128, 128
      %15 = vsyncadd [#allocation3], %s14
      %s17 = sshll.u32 [#allocation2], 4
      %s18 = int_to_ptr.vmem [resolvable:$true] %s17
      %20 = dma.hbm_to_vmem [thread:$0]  %s0, 128, %s18, [#allocation3]
    $region5: #{tpu_custom_call.1} parent=1 // pred_fallthru
      _
    // Predicated region
    $region6: #{tpu_custom_call.1} parent=1 // pred_check
      _
    $region7: #{tpu_custom_call.1} parent=1 // pred_check_branch
      %22 = sbr.rel (0) target = $region9
    $region8: #{tpu_custom_call.1} parent=1 // pred_region
      %s24 = ssub.s32 2048, 2048
      %25 = vsyncadd [#allocation6], %s24
      %s26 = sshll.u32 [#allocation5], 4
      %s27 = int_to_ptr.vmem [resolvable:$true] %s26
      %32 = dma.hbm_to_vmem [thread:$0]  %s1, 2048, %s27, [#allocation6], 128, 128, 8
    $region9: #{tpu_custom_call.1} parent=1 // pred_fallthru
      _
    // Predicated region
    $region10: #{tpu_custom_call.1} parent=1 // pred_check
      _
    $region11: #{tpu_custom_call.1} parent=1 // pred_check_branch
      %34 = sbr.rel (0) target = $region13
    $region12: #{tpu_custom_call.1} parent=1 // pred_region
      _
    $region13: #{tpu_custom_call.1} parent=1 // pred_fallthru
      _
    // Predicated region
    $region14: #{tpu_custom_call.1} parent=1 // pred_check
      _
    $region15: #{tpu_custom_call.1} parent=1 // pred_check_branch
      %36 = sbr.rel (0) target = $region17
    $region16: #{tpu_custom_call.1} parent=1 // pred_region
      %37 = dma.done [#allocation3], 128
    $region17: #{tpu_custom_call.1} parent=1 // pred_fallthru
      _
    // Predicated region
    $region18: #{tpu_custom_call.1} parent=1 // pred_check
      _
    $region19: #{tpu_custom_call.1} parent=1 // pred_check_branch
      %39 = sbr.rel (0) target = $region21
    $region20: #{tpu_custom_call.1} parent=1 // pred_region
      %40 = dma.done [#allocation6], 2048
    $region21: #{tpu_custom_call.1} parent=1 // pred_fallthru
      _
    %p41 = scmp.eq.s32.totalorder 0, 0
    // Predicated region
    $region22: #{tpu_custom_call.1} parent=1 // pred_check
      %p42 = pneg %p41
    $region23: #{tpu_custom_call.1} parent=1 // pred_check_branch
      %44 = sbr.rel (%p42) target = $region25
    $region24: #{tpu_custom_call.1} parent=1 // pred_region
      %45 = vst [vmem:[#allocation7] sm:$0xff] 0.0
    $region25: #{tpu_custom_call.1} parent=1 // pred_fallthru
      _
    %v46 = vld [vmem:[#allocation7] sm:$0xff]
    %v47 = vld [vmem:[#allocation2] sm:$0xff]
    %v48 = vld [vmem:[#allocation5] sm:$0xff]
    %v49 = vld [vmem:[#allocation5 + $0x8] sm:$0xff]
    %v50 = vld [vmem:[#allocation5 + $0x10] sm:$0xff]
    %v51 = vld [vmem:[#allocation5 + $0x18] sm:$0xff]
    %v52 = vld [vmem:[#allocation5 + $0x20] sm:$0xff]
    %v53 = vld [vmem:[#allocation5 + $0x28] sm:$0xff]
    %v54 = vld [vmem:[#allocation5 + $0x30] sm:$0xff]
    %v55 = vld [vmem:[#allocation5 + $0x38] sm:$0xff]
    %v56 = vld [vmem:[#allocation5 + $0x40] sm:$0xff]
    %v57 = vld [vmem:[#allocation5 + $0x48] sm:$0xff]
    %v58 = vld [vmem:[#allocation5 + $0x50] sm:$0xff]
    %v59 = vld [vmem:[#allocation5 + $0x58] sm:$0xff]
    %v60 = vld [vmem:[#allocation5 + $0x60] sm:$0xff]
    %v61 = vld [vmem:[#allocation5 + $0x68] sm:$0xff]
    %v62 = vld [vmem:[#allocation5 + $0x70] sm:$0xff]
    %v63 = vld [vmem:[#allocation5 + $0x78] sm:$0xff]
    %64 = vmatprep.subr.mxu0 0.0
    %65 = vmatpush1.msra.mxu0 %v48
    %66 = vmatprep.subr.mxu0 0.0
    %67 = vmatpush1.msra.mxu0 %v49
    %68 = vmatprep.subr.mxu0 0.0
    %69 = vmatpush1.msra.mxu0 %v50
    %70 = vmatprep.subr.mxu0 0.0
    %71 = vmatpush1.msra.mxu0 %v51
    %72 = vmatprep.subr.mxu0 0.0
    %73 = vmatpush1.msra.mxu0 %v52
    %74 = vmatprep.subr.mxu0 0.0
    %75 = vmatpush1.msra.mxu0 %v53
    %76 = vmatprep.subr.mxu0 0.0
    %77 = vmatpush1.msra.mxu0 %v54
    %78 = vmatprep.subr.mxu0 0.0
    %79 = vmatpush1.msra.mxu0 %v55
    %80 = vmatprep.subr.mxu0 0.0
    %81 = vmatpush1.msra.mxu0 %v56
    %82 = vmatprep.subr.mxu0 0.0
    %83 = vmatpush1.msra.mxu0 %v57
    %84 = vmatprep.subr.mxu0 0.0
    %85 = vmatpush1.msra.mxu0 %v58
    %86 = vmatprep.subr.mxu0 0.0
    %87 = vmatpush1.msra.mxu0 %v59
    %88 = vmatprep.subr.mxu0 0.0
    %89 = vmatpush1.msra.mxu0 %v60
    %90 = vmatprep.subr.mxu0 0.0
    %91 = vmatpush1.msra.mxu0 %v61
    %92 = vmatprep.subr.mxu0 0.0
    %93 = vmatpush1.msra.mxu0 %v62
    %94 = vmatprep.subr.mxu0 0.0
    %95 = vmatpush1.msra.mxu0 %v63
    %96 = vmatprep.subr.mxu0 0.0
    %97 = vmatpush1.msra.mxu0 0.0
    %98 = vmatprep.subr.mxu0 0.0
    %99 = vmatpush1.msra.mxu0 0.0
    %100 = vmatprep.subr.mxu0 0.0
    %101 = vmatpush1.msra.mxu0 0.0
    %102 = vmatprep.subr.mxu0 0.0
    %103 = vmatpush1.msra.mxu0 0.0
    %104 = vmatprep.subr.mxu0 0.0
    %105 = vmatpush1.msra.mxu0 0.0
    %106 = vmatprep.subr.mxu0 0.0
    %107 = vmatpush1.msra.mxu0 0.0
    %108 = vmatprep.subr.mxu0 0.0
    %109 = vmatpush1.msra.mxu0 0.0
    %110 = vmatprep.subr.mxu0 0.0
    %111 = vmatpush1.msra.mxu0 0.0
    %112 = vmatprep.subr.mxu0 0.0
    %113 = vmatpush1.msra.mxu0 0.0
    %114 = vmatprep.subr.mxu0 0.0
    %115 = vmatpush1.msra.mxu0 0.0
    %116 = vmatprep.subr.mxu0 0.0
    %117 = vmatpush1.msra.mxu0 0.0
    %118 = vmatprep.subr.mxu0 0.0
    %119 = vmatpush1.msra.mxu0 0.0
    %120 = vmatprep.subr.mxu0 0.0
    %121 = vmatpush1.msra.mxu0 0.0
    %122 = vmatprep.subr.mxu0 0.0
    %123 = vmatpush1.msra.mxu0 0.0
    %124 = vmatprep.subr.mxu0 0.0
    %125 = vmatpush1.msra.mxu0 0.0
    %126 = vmatprep.subr.mxu0 0.0
    %127 = vmatpush1.msra.mxu0 0.0
    %128 = vmatprep.mubr.f32.mxu0 0.0
    %129 = vmatmul.mubr.f32.gmra.mrb[0].mxu0 %v47
    %v130 = vpop.f32.mrb[0].mxu0
    %v131 = vadd.f32 0.0, %v130
    %v132 = vpop.f32.mrb[0].mxu0
    %133 = vdwg.mxu0
    %v134 = vadd.f32 %v46, %v131
    %135 = vst [vmem:[#allocation7] sm:$0xff] %v134
    // Predicated region
    $region26: #{tpu_custom_call.1} parent=1 // pred_check
      %p136 = pneg %p41
    $region27: #{tpu_custom_call.1} parent=1 // pred_check_branch
      %138 = sbr.rel (%p136) target = $region29
    $region28: #{tpu_custom_call.1} parent=1 // pred_region
      %v139 = vld [vmem:[#allocation7] sm:$0xff]
      %v140 = vld [vmem:[%s2] sm:$0x1]
      %v142 = vlaneseq
      %v143 = vshrl.u32 %v142, 7
      %v144 = vsub.s32 0, %v143
      %v145 = vrot.slane %v140, %v144
      %v147 = vadd.f32 %v139, %v145
      %148 = vst [vmem:[#allocation7] sm:$0xff] %v147
    $region29: #{tpu_custom_call.1} parent=1 // pred_fallthru
      _
    // Predicated region
    $region30: #{tpu_custom_call.1} parent=1 // pred_check
      _
    $region31: #{tpu_custom_call.1} parent=1 // pred_check_branch
      %150 = sbr.rel (0) target = $region33
    $region32: #{tpu_custom_call.1} parent=1 // pred_region
      %s152 = ssub.s32 128, 128
      %153 = vsyncadd [#allocation4], %s152
      %s155 = sshll.u32 [#allocation7], 4
      %s156 = int_to_ptr.vmem [resolvable:$true] %s155
      %158 = dma.vmem_to_hbm [thread:$0]  %s156, 128, %s3, [#allocation4]
    $region33: #{tpu_custom_call.1} parent=1 // pred_fallthru
      _
    // Predicated region
    $region34: #{tpu_custom_call.1} parent=1 // pred_check
      _
    $region35: #{tpu_custom_call.1} parent=1 // pred_check_branch
      %160 = sbr.rel (0) target = $region37
    $region36: #{tpu_custom_call.1} parent=1 // pred_region
      %161 = dma.done [#allocation4], 128
    $region37: #{tpu_custom_call.1} parent=1 // pred_fallthru
      _
    %162 = vsyncpa [#allocation3], 1
    %163 = vsyncpa [#allocation6], 1
    %164 = vsyncpa [#allocation4], 1

</llo_original>
